<compile_context>
chip_gen: v6e
topology: v6e:2x2x1
jax: 0.10.0
libtpu: 0.0.40
codegen_flags: <defaults>
</compile_context>

<pallas_src>
import functools

import jax
import jax.numpy as jnp
from jax.experimental import pallas as pl
from jax.experimental.pallas import tpu as pltpu

_LANES = 128


def _ln_rowwise_kernel(alpha_ref, beta_ref, x_ref, o_ref, *, eps, h):
    """Generic path: one logical row per physical row (H >= 128, or tiny tails)."""
    x = x_ref[...].astype(jnp.float32)                  # (bm, H)
    mean = jnp.mean(x, axis=-1, keepdims=True)          # (bm, 1)
    diff = x - mean
    # torch.std default is unbiased (divide by H-1); H == 1 -> NaN like torch.
    rdenom = (1.0 / (h - 1)) if h > 1 else float("nan")
    var = jnp.sum(diff * diff, axis=-1, keepdims=True) * rdenom
    std = jnp.sqrt(var)
    inv = pl.reciprocal(std + eps, approx=False)        # one reciprocal per row
    scale = inv * alpha_ref[0]                          # fold alpha into the row scale
    o_ref[...] = (diff * scale + beta_ref[0]).astype(o_ref.dtype)


def _ln_packed_kernel(alpha_ref, beta_ref, seg_ref, x_ref, o_ref, *, eps, h):
    """Lane-dense path: k = 128 // h logical rows packed into one 128-lane row.
    The per-row reduction is a segmented reduction done with a block-diagonal
    (W, W) matmul on the MXU (seg precomputed in the wrapper, fetched once via a
    constant index_map), which also broadcasts the per-segment stats back across
    each segment -- no cross-lane reshapes needed."""
    x_native = x_ref[...]                               # (bm, W), native dtype
    seg = seg_ref[...]                                  # (W, W), 0/1, resident
    # mean: segmented sum; operands keep the input dtype when it is 16-bit
    # (exact numerics, avoids v5e's slow f32 MXU path for bf16 inputs).
    mean = jnp.dot(x_native, seg, preferred_element_type=jnp.float32) * (1.0 / h)
    x = x_native.astype(jnp.float32)
    diff = x - mean
    rdenom = (1.0 / (h - 1)) if h > 1 else float("nan")
    ssq = jnp.dot(diff * diff, seg.astype(jnp.float32),
                  preferred_element_type=jnp.float32)
    std = jnp.sqrt(ssq * rdenom)
    inv = pl.reciprocal(std + eps, approx=False)
    scale = inv * alpha_ref[0]
    o_ref[...] = (diff * scale + beta_ref[0]).astype(o_ref.dtype)


def _vmem_ceiling_bytes():
    """~0.75x of this generation's VMEM capacity (48 MiB on v7x, 96 MiB on v5e/v6e)."""
    cap = 64 << 20  # conservative default (v7x per-core VMEM)
    try:
        info = pltpu.get_tpu_info()
        cap = int(getattr(info, "vmem_capacity_bytes", cap)) or cap
    except Exception:
        pass
    return (cap * 3) // 4


def _choose_block_rows(Rp, W, itemsize, sub, vmem_ceiling, block_rows):
    """Pick the row-tile size: big HBM-streaming tiles, balanced, >= 2 blocks
    when possible (v7x megacore), clamped so VMEM usage stays under the ceiling."""
    if block_rows is not None:
        bm = min(int(block_rows), Rp)
        if bm < Rp:
            bm = max(sub, (bm // sub) * sub)
        return bm
    # Target input-tile bytes per generation (mem-bound kernel).
    target_in_bytes = (6 << 20) if vmem_ceiling >= (72 << 20) else (3 << 20)
    # Per-row VMEM footprint estimate: double-buffered in+out tiles + ~8 f32 temps.
    per_row = 2 * 2 * W * itemsize + 8 * W * 4
    budget_rows = max(sub, (vmem_ceiling - (4 << 20)) // per_row)
    bm_max = max(sub, min(target_in_bytes // max(W * itemsize, 1), budget_rows))
    num_blocks = max(1, pl.cdiv(Rp, bm_max))
    if Rp >= 2 * sub:
        num_blocks = max(num_blocks, 2)      # keep both v7x TensorCores busy
    bm = sub * pl.cdiv(pl.cdiv(Rp, num_blocks), sub)   # balanced, sublane-aligned
    return min(bm, Rp)


def _ln_call(x2, alpha, beta, eps, h, packed, block_rows=None):
    """One pallas_call over a 2-D view x2 of shape (rows, W)."""
    Rp, W = x2.shape
    itemsize = jnp.dtype(x2.dtype).itemsize
    # sublane packing for the block's second-to-last dim (8 f32 / 16 bf16 / 32 int8)
    sub = {4: 8, 2: 16, 1: 32}.get(itemsize, 8)
    ceiling = _vmem_ceiling_bytes()
    bm = _choose_block_rows(Rp, W, itemsize, sub, ceiling, block_rows)
    grid = (pl.cdiv(Rp, bm),)

    in_specs = [
        pl.BlockSpec(memory_space=pltpu.SMEM),   # alpha (1,)
        pl.BlockSpec(memory_space=pltpu.SMEM),   # beta  (1,)
    ]
    operands = [alpha, beta]

    if packed:
        # Block-diagonal 0/1 segment matrix, hoisted out of the kernel body.
        seg_dtype = x2.dtype if itemsize == 2 else jnp.float32
        seg_i = jax.lax.broadcasted_iota(jnp.int32, (W, W), 0) // h
        seg_j = jax.lax.broadcasted_iota(jnp.int32, (W, W), 1) // h
        seg = (seg_i == seg_j).astype(seg_dtype)
        in_specs.append(pl.BlockSpec((W, W), lambda i: (0, 0)))  # constant -> resident
        operands.append(seg)
        kernel = functools.partial(_ln_packed_kernel, eps=eps, h=h)
    else:
        kernel = functools.partial(_ln_rowwise_kernel, eps=eps, h=h)

    in_specs.append(pl.BlockSpec((bm, W), lambda i: (i, 0)))
    operands.append(x2)

    cost = pl.CostEstimate(
        flops=8 * Rp * W,
        transcendentals=2 * Rp * (W if packed else 1),
        bytes_accessed=2 * Rp * W * itemsize,
    )

    return pl.pallas_call(
        kernel,
        out_shape=jax.ShapeDtypeStruct((Rp, W), x2.dtype),
        grid=grid,
        in_specs=in_specs,
        out_specs=pl.BlockSpec((bm, W), lambda i: (i, 0)),
        compiler_params=pltpu.CompilerParams(
            dimension_semantics=("parallel",),
            vmem_limit_bytes=int(ceiling),
        ),
        cost_estimate=cost,
    )(*operands)


def layer_normalization(x, alpha, beta, *, eps: float = 1e-8, block_rows=None):
    """Pallas LayerNormalization over the last axis of x (matches the PyTorch module)."""
    orig_shape = x.shape
    H = orig_shape[-1]
    x2 = x.reshape(-1, H)
    R = x2.shape[0]

    # Pack k logical rows into one 128-lane physical row when H is a small
    # divisor of 128 -- keeps loads/stores lane-dense (no masked partial stores
    # at e.g. H=32).  The reshape of a contiguous array is free.
    if H < _LANES and _LANES % H == 0:
        k = _LANES // H
    else:
        k = 1

    if k > 1:
        R_main = (R // k) * k
        parts = []
        if R_main > 0:
            xm = x2[:R_main].reshape(R_main // k, H * k)
            om = _ln_call(xm, alpha, beta, eps, H, packed=True, block_rows=block_rows)
            parts.append(om.reshape(R_main, H))
        if R_main < R:
            # Tiny (< k rows) rowwise tail; keeps the bulk lane-dense for any R.
            ot = _ln_call(x2[R_main:], alpha, beta, eps, H, packed=False)
            parts.append(ot)
        out2 = parts[0] if len(parts) == 1 else jnp.concatenate(parts, axis=0)
    else:
        out2 = _ln_call(x2, alpha, beta, eps, H, packed=False, block_rows=block_rows)

    return out2.reshape(orig_shape)


if __name__ == "__main__":
    key = jax.random.PRNGKey(0)

    # layout: (batch=2, seq=8, hidden=32); normalize over hidden (last axis)
    B, S, H = 2, 8, 32
    x = jax.random.normal(key, (B, S, H), dtype=jnp.float32)

    # deterministic parameter init, matching nn.Parameter(torch.ones(size=1))
    alpha = jnp.ones((1,), dtype=jnp.float32)
    beta = jnp.ones((1,), dtype=jnp.float32)

    eps = 1e-8

    def ref_ln(v):
        mean = jnp.mean(v, axis=-1, keepdims=True)
        std = jnp.std(v, axis=-1, keepdims=True, ddof=1)
        return alpha[0] * (v - mean) / (std + eps) + beta[0]

    out = jax.block_until_ready(layer_normalization(x, alpha, beta, eps=eps))
    assert out.shape == x.shape and out.dtype == x.dtype
    assert jnp.allclose(out, ref_ln(x), atol=1e-5, rtol=1e-5), "mismatch (packed path)"

    # generic (H >= 128) path with a ragged last grid block
    x2 = jax.random.normal(jax.random.PRNGKey(1), (3, 7, 256), dtype=jnp.float32)
    out2 = jax.block_until_ready(layer_normalization(x2, alpha, beta, eps=eps))
    assert jnp.allclose(out2, ref_ln(x2), atol=1e-5, rtol=1e-5), "mismatch (rowwise path)"

    # packed path with an R % k != 0 remainder (tiny rowwise tail call)
    x3 = jax.random.normal(jax.random.PRNGKey(2), (5, 3, 32), dtype=jnp.float32)
    out3 = jax.block_until_ready(layer_normalization(x3, alpha, beta, eps=eps))
    assert jnp.allclose(out3, ref_ln(x3), atol=1e-5, rtol=1e-5), "mismatch (packed+tail path)"

    print("KERNEL_OK")
</pallas_src>

<mosaic_0001>
module attributes {stable_mosaic.version = 11 : i64} {
  func.func @_ln_packed_kernel(%arg0: i32, %arg1: memref<1xf32, #tpu.memory_space<smem>>, %arg2: memref<1xf32, #tpu.memory_space<smem>>, %arg3: memref<128x128xf32, #tpu.memory_space<vmem>>, %arg4: memref<4x128xf32, #tpu.memory_space<vmem>>, %arg5: memref<4x128xf32, #tpu.memory_space<vmem>>) attributes {dimension_semantics = [#tpu.dimension_semantics<parallel>], iteration_bounds = array<i64: 1>, scalar_prefetch = 0 : i64, scratch_operands = 0 : i64, tpu.core_type = #tpu.core_type<tc>, window_params = [{transform_indices = @transform_0, window_bounds = array<i64: 1>}, {transform_indices = @transform_1, window_bounds = array<i64: 1>}, {pipeline_mode = #tpu.pipeline_mode<synchronous>, transform_indices = @transform_2, window_bounds = array<i64: 128, 128>}, {transform_indices = @transform_3, window_bounds = array<i64: 4, 128>}, {transform_indices = @transform_4, window_bounds = array<i64: 4, 128>}]} {
    %c0 = arith.constant 0 : index
    %c0_0 = arith.constant 0 : index
    %0 = vector.load %arg4[%c0, %c0_0] : memref<4x128xf32, #tpu.memory_space<vmem>>, vector<4x128xf32>
    %c0_1 = arith.constant 0 : index
    %c0_2 = arith.constant 0 : index
    %1 = vector.load %arg3[%c0_1, %c0_2] : memref<128x128xf32, #tpu.memory_space<vmem>>, vector<128x128xf32>
    %cst = arith.constant dense<0.000000e+00> : vector<4x128xf32>
    %2 = tpu.matmul %0, %1, %cst {dimension_numbers = #tpu.dot_dimension_numbers<[1], [0], [0], [1], [0, 0, 1, 1], [], []>} : vector<4x128xf32>, vector<128x128xf32>, vector<4x128xf32> -> vector<4x128xf32>
    %cst_3 = arith.constant 3.125000e-02 : f32
    %3 = vector.broadcast %cst_3 : f32 to vector<4x128xf32>
    %4 = arith.mulf %2, %3 : vector<4x128xf32>
    %5 = arith.subf %0, %4 : vector<4x128xf32>
    %6 = arith.mulf %5, %5 : vector<4x128xf32>
    %cst_4 = arith.constant dense<0.000000e+00> : vector<4x128xf32>
    %7 = tpu.matmul %6, %1, %cst_4 {dimension_numbers = #tpu.dot_dimension_numbers<[1], [0], [0], [1], [0, 0, 1, 1], [], []>} : vector<4x128xf32>, vector<128x128xf32>, vector<4x128xf32> -> vector<4x128xf32>
    %cst_5 = arith.constant 0.0322580636 : f32
    %8 = vector.broadcast %cst_5 : f32 to vector<4x128xf32>
    %9 = arith.mulf %7, %8 : vector<4x128xf32>
    %10 = math.sqrt %9 : vector<4x128xf32>
    %cst_6 = arith.constant 9.99999993E-9 : f32
    %11 = vector.broadcast %cst_6 : f32 to vector<4x128xf32>
    %12 = arith.addf %10, %11 : vector<4x128xf32>
    %13 = tpu.reciprocal %12 : vector<4x128xf32> -> vector<4x128xf32>
    %c0_7 = arith.constant 0 : index
    %14 = memref.load %arg1[%c0_7] : memref<1xf32, #tpu.memory_space<smem>>
    %15 = vector.broadcast %14 : f32 to vector<4x128xf32>
    %16 = arith.mulf %13, %15 : vector<4x128xf32>
    %17 = arith.mulf %5, %16 : vector<4x128xf32>
    %c0_8 = arith.constant 0 : index
    %18 = memref.load %arg2[%c0_8] : memref<1xf32, #tpu.memory_space<smem>>
    %19 = vector.broadcast %18 : f32 to vector<4x128xf32>
    %20 = arith.addf %17, %19 : vector<4x128xf32>
    %c0_9 = arith.constant 0 : index
    %c0_10 = arith.constant 0 : index
    %21 = vector.load %arg5[%c0_9, %c0_10] : memref<4x128xf32, #tpu.memory_space<vmem>>, vector<4x128xf32>
    tpu.vector_store %arg5[%c0_9, %c0_10], %20 {strides = array<i32>} : memref<4x128xf32, #tpu.memory_space<vmem>>, vector<4x128xf32>,
    return
  }
  func.func @transform_0(%arg0: i32) -> i32 {
    %c0_i32 = arith.constant 0 : i32
    %c0_i32_0 = arith.constant 0 : i32
    return %c0_i32 : i32
  }
  func.func @transform_1(%arg0: i32) -> i32 {
    %c0_i32 = arith.constant 0 : i32
    %c0_i32_0 = arith.constant 0 : i32
    return %c0_i32 : i32
  }
  func.func @transform_2(%arg0: i32) -> (i32, i32) {
    %c0_i32 = arith.constant 0 : i32
    %c0_i32_0 = arith.constant 0 : i32
    %c0_i32_1 = arith.constant 0 : i32
    return %c0_i32, %c0_i32_0 : i32, i32
  }
  func.func @transform_3(%arg0: i32) -> (i32, i32) {
    %c0_i32 = arith.constant 0 : i32
    %c0_i32_0 = arith.constant 0 : i32
    return %arg0, %c0_i32 : i32, i32
  }
  func.func @transform_4(%arg0: i32) -> (i32, i32) {
    %c0_i32 = arith.constant 0 : i32
    %c0_i32_0 = arith.constant 0 : i32
    return %arg0, %c0_i32 : i32, i32
  }
}

</mosaic_0001>

<llo_original>
// kernel: tpu_custom_call.1
$region0: #{tpu_custom_call.1}
  #allocation0 [shape = 'u32[]', space=smem, size = 0x4, offset = 0x4, fixed_abs, tag = 'smem constant byte address 0x4 - core index']
  #allocation1 [shape = 'u32[144,128]{1,0:T(1,128)}', space=vmem, size = 0x12000, scoped, tag = 'internal scratch']
  #allocation2 [shape = 'f32[1]{0:T(128)S(6)}', space=smem, size = 0x200, scoped, tag = 'scoped memory for tpu_custom_call.1']
  #allocation3 [shape = 'f32[1]{0:T(128)S(6)}', space=smem, size = 0x200, scoped, tag = 'scoped memory for tpu_custom_call.1']
  %s0 = inlined_call_operand.<no memory space> [shape: f32[1], index: 0, kind: input, shape index: {}]
  %s1 = inlined_call_operand.<no memory space> [shape: f32[1], index: 1, kind: input, shape index: {}]
  %s2 = inlined_call_operand.hbm [shape: f32[128,128], index: 2, kind: input, shape index: {}]
  %s3 = inlined_call_operand.vmem [shape: f32[4,128], index: 3, kind: input, shape index: {}]
  %s4 = inlined_call_operand.hbm [shape: f32[4,128], index: 4, kind: output, shape index: {}]
  %s5 = sld [smem:[#allocation0]]
  $region30: #{tpu_custom_call.1} parent=0
    _
  %s7 = ssub.s32 1, %s5
  %s8 = scalar_select 0, %s7, %s5
  %9 = sst [smem:[#allocation2]] %s0
  %10 = sst [smem:[#allocation3]] %s1
  $region1: #{tpu_custom_call.1} parent=0
    #allocation4 [shape = 'u8[65536]{0}', space=vmem, size = 0x10000, scoped, tag = 'input window, operand 2, single buffered']
    #allocation5 [shape = 's32[1]{0}', space=sflag, size = 0x4, scoped, tag = 'scoped memory for tpu_custom_call.1']
    #allocation6 [shape = 's32[1]{0}', space=sflag, size = 0x4, scoped, tag = 'scoped memory for tpu_custom_call.1']
    #allocation7 [shape = 'u8[2048]{0}', space=vmem, size = 0x800, scoped, tag = 'output window, operand 0, single buffered']
    %11 = vsyncpa [#allocation5], 0
    %12 = vsyncpa [#allocation6], 0
    // Predicated region
    $region2: #{tpu_custom_call.1} parent=1 // pred_check
      _
    $region3: #{tpu_custom_call.1} parent=1 // pred_check_branch
      %14 = sbr.rel (0) target = $region5
    $region4: #{tpu_custom_call.1} parent=1 // pred_region
      _
    $region5: #{tpu_custom_call.1} parent=1 // pred_fallthru
      _
    // Predicated region
    $region6: #{tpu_custom_call.1} parent=1 // pred_check
      _
    $region7: #{tpu_custom_call.1} parent=1 // pred_check_branch
      %16 = sbr.rel (0) target = $region9
    $region8: #{tpu_custom_call.1} parent=1 // pred_region
      _
    $region9: #{tpu_custom_call.1} parent=1 // pred_fallthru
      _
    // Predicated region
    $region10: #{tpu_custom_call.1} parent=1 // pred_check
      _
    $region11: #{tpu_custom_call.1} parent=1 // pred_check_branch
      %18 = sbr.rel (0) target = $region13
    $region12: #{tpu_custom_call.1} parent=1 // pred_region
      %s20 = ssub.s32 2048, 2048
      %21 = vsyncadd [#allocation5], %s20
      %s22 = sshll.u32 [#allocation4], 4
      %s23 = int_to_ptr.vmem [resolvable:$true] %s22
      %28 = dma.hbm_to_vmem [thread:$0]  %s2, 2048, %s23, [#allocation5], 128, 128, 8
    $region13: #{tpu_custom_call.1} parent=1 // pred_fallthru
      _
    // Predicated region
    $region14: #{tpu_custom_call.1} parent=1 // pred_check
      _
    $region15: #{tpu_custom_call.1} parent=1 // pred_check_branch
      %30 = sbr.rel (0) target = $region17
    $region16: #{tpu_custom_call.1} parent=1 // pred_region
      _
    $region17: #{tpu_custom_call.1} parent=1 // pred_fallthru
      _
    // Predicated region
    $region18: #{tpu_custom_call.1} parent=1 // pred_check
      _
    $region19: #{tpu_custom_call.1} parent=1 // pred_check_branch
      %32 = sbr.rel (0) target = $region21
    $region20: #{tpu_custom_call.1} parent=1 // pred_region
      %33 = dma.done [#allocation5], 2048
    $region21: #{tpu_custom_call.1} parent=1 // pred_fallthru
      _
    %v34 = vld [vmem:[%s3] sm:$0xf]
    %v35 = vld [vmem:[#allocation4] sm:$0xff]
    %v36 = vld [vmem:[#allocation4 + $0x8] sm:$0xff]
    %v37 = vld [vmem:[#allocation4 + $0x10] sm:$0xff]
    %v38 = vld [vmem:[#allocation4 + $0x18] sm:$0xff]
    %v39 = vld [vmem:[#allocation4 + $0x20] sm:$0xff]
    %v40 = vld [vmem:[#allocation4 + $0x28] sm:$0xff]
    %v41 = vld [vmem:[#allocation4 + $0x30] sm:$0xff]
    %v42 = vld [vmem:[#allocation4 + $0x38] sm:$0xff]
    %v43 = vld [vmem:[#allocation4 + $0x40] sm:$0xff]
    %v44 = vld [vmem:[#allocation4 + $0x48] sm:$0xff]
    %v45 = vld [vmem:[#allocation4 + $0x50] sm:$0xff]
    %v46 = vld [vmem:[#allocation4 + $0x58] sm:$0xff]
    %v47 = vld [vmem:[#allocation4 + $0x60] sm:$0xff]
    %v48 = vld [vmem:[#allocation4 + $0x68] sm:$0xff]
    %v49 = vld [vmem:[#allocation4 + $0x70] sm:$0xff]
    %v50 = vld [vmem:[#allocation4 + $0x78] sm:$0xff]
    %51 = vmatprep.subr.mxu0 0.0
    %52 = vmatpush1.msra.mxu0 %v50
    %53 = vmatprep.subr.mxu0 0.0
    %54 = vmatpush1.msra.mxu0 %v49
    %55 = vmatprep.subr.mxu0 0.0
    %56 = vmatpush1.msra.mxu0 %v48
    %57 = vmatprep.subr.mxu0 0.0
    %58 = vmatpush1.msra.mxu0 %v47
    %59 = vmatprep.subr.mxu0 0.0
    %60 = vmatpush1.msra.mxu0 %v46
    %61 = vmatprep.subr.mxu0 0.0
    %62 = vmatpush1.msra.mxu0 %v45
    %63 = vmatprep.subr.mxu0 0.0
    %64 = vmatpush1.msra.mxu0 %v44
    %65 = vmatprep.subr.mxu0 0.0
    %66 = vmatpush1.msra.mxu0 %v43
    %67 = vmatprep.subr.mxu0 0.0
    %68 = vmatpush1.msra.mxu0 %v42
    %69 = vmatprep.subr.mxu0 0.0
    %70 = vmatpush1.msra.mxu0 %v41
    %71 = vmatprep.subr.mxu0 0.0
    %72 = vmatpush1.msra.mxu0 %v40
    %73 = vmatprep.subr.mxu0 0.0
    %74 = vmatpush1.msra.mxu0 %v39
    %75 = vmatprep.subr.mxu0 0.0
    %76 = vmatpush1.msra.mxu0 %v38
    %77 = vmatprep.subr.mxu0 0.0
    %78 = vmatpush1.msra.mxu0 %v37
    %79 = vmatprep.subr.mxu0 0.0
    %80 = vmatpush1.msra.mxu0 %v36
    %81 = vmatprep.subr.mxu0 0.0
    %82 = vmatpush1.msra.mxu0 %v35
    %83 = vmatprep.subr.mxu0 0.0
    %84 = vmatpush2.msra.mxu0 0.0
    %85 = vmatprep.subr.mxu0 0.0
    %86 = vmatpush2.msra.mxu0 0.0
    %87 = vmatprep.subr.mxu0 0.0
    %88 = vmatpush2.msra.mxu0 0.0
    %89 = vmatprep.subr.mxu0 0.0
    %90 = vmatpush2.msra.mxu0 0.0
    %91 = vmatprep.subr.mxu0 0.0
    %92 = vmatpush2.msra.mxu0 0.0
    %93 = vmatprep.subr.mxu0 0.0
    %94 = vmatpush2.msra.mxu0 0.0
    %95 = vmatprep.subr.mxu0 0.0
    %96 = vmatpush2.msra.mxu0 0.0
    %97 = vmatprep.subr.mxu0 0.0
    %98 = vmatpush2.msra.mxu0 0.0
    %99 = vmatprep.subr.mxu0 0.0
    %100 = vmatpush2.msra.mxu0 0.0
    %101 = vmatprep.subr.mxu0 0.0
    %102 = vmatpush2.msra.mxu0 0.0
    %103 = vmatprep.subr.mxu0 0.0
    %104 = vmatpush2.msra.mxu0 0.0
    %105 = vmatprep.subr.mxu0 0.0
    %106 = vmatpush2.msra.mxu0 0.0
    %107 = vmatprep.subr.mxu0 0.0
    %108 = vmatpush2.msra.mxu0 0.0
    %109 = vmatprep.subr.mxu0 0.0
    %110 = vmatpush2.msra.mxu0 0.0
    %111 = vmatprep.subr.mxu0 0.0
    %112 = vmatpush2.msra.mxu0 0.0
    %113 = vmatprep.subr.mxu0 0.0
    %114 = vmatpush2.msra.mxu0 0.0
    %115 = vmatprep.mubr.f32.mxu0 0.0
    %116 = vmatmul.mubr.f32.gmra.mxu0 %v34
    %v117 = vpop.f32.mrf.mxu0
    %v118 = vadd.f32 0.0, %v117
    %v119 = vpop.f32.mrf.mxu0
    %120 = vdwg.mxu0
    %v121 = vmul.f32 %v118, 0.03125
    %v122 = vsub.f32 %v34, %v121
    %v123 = vmul.f32 %v122, %v122
    %124 = vmatprep.subr.mxu0 0.0
    %125 = vmatpush1.msra.mxu0 %v50
    %126 = vmatprep.subr.mxu0 0.0
    %127 = vmatpush1.msra.mxu0 %v49
    %128 = vmatprep.subr.mxu0 0.0
    %129 = vmatpush1.msra.mxu0 %v48
    %130 = vmatprep.subr.mxu0 0.0
    %131 = vmatpush1.msra.mxu0 %v47
    %132 = vmatprep.subr.mxu0 0.0
    %133 = vmatpush1.msra.mxu0 %v46
    %134 = vmatprep.subr.mxu0 0.0
    %135 = vmatpush1.msra.mxu0 %v45
    %136 = vmatprep.subr.mxu0 0.0
    %137 = vmatpush1.msra.mxu0 %v44
    %138 = vmatprep.subr.mxu0 0.0
    %139 = vmatpush1.msra.mxu0 %v43
    %140 = vmatprep.subr.mxu0 0.0
    %141 = vmatpush1.msra.mxu0 %v42
    %142 = vmatprep.subr.mxu0 0.0
    %143 = vmatpush1.msra.mxu0 %v41
    %144 = vmatprep.subr.mxu0 0.0
    %145 = vmatpush1.msra.mxu0 %v40
    %146 = vmatprep.subr.mxu0 0.0
    %147 = vmatpush1.msra.mxu0 %v39
    %148 = vmatprep.subr.mxu0 0.0
    %149 = vmatpush1.msra.mxu0 %v38
    %150 = vmatprep.subr.mxu0 0.0
    %151 = vmatpush1.msra.mxu0 %v37
    %152 = vmatprep.subr.mxu0 0.0
    %153 = vmatpush1.msra.mxu0 %v36
    %154 = vmatprep.subr.mxu0 0.0
    %155 = vmatpush1.msra.mxu0 %v35
    %156 = vmatprep.subr.mxu0 0.0
    %157 = vmatpush2.msra.mxu0 0.0
    %158 = vmatprep.subr.mxu0 0.0
    %159 = vmatpush2.msra.mxu0 0.0
    %160 = vmatprep.subr.mxu0 0.0
    %161 = vmatpush2.msra.mxu0 0.0
    %162 = vmatprep.subr.mxu0 0.0
    %163 = vmatpush2.msra.mxu0 0.0
    %164 = vmatprep.subr.mxu0 0.0
    %165 = vmatpush2.msra.mxu0 0.0
    %166 = vmatprep.subr.mxu0 0.0
    %167 = vmatpush2.msra.mxu0 0.0
    %168 = vmatprep.subr.mxu0 0.0
    %169 = vmatpush2.msra.mxu0 0.0
    %170 = vmatprep.subr.mxu0 0.0
    %171 = vmatpush2.msra.mxu0 0.0
    %172 = vmatprep.subr.mxu0 0.0
    %173 = vmatpush2.msra.mxu0 0.0
    %174 = vmatprep.subr.mxu0 0.0
    %175 = vmatpush2.msra.mxu0 0.0
    %176 = vmatprep.subr.mxu0 0.0
    %177 = vmatpush2.msra.mxu0 0.0
    %178 = vmatprep.subr.mxu0 0.0
    %179 = vmatpush2.msra.mxu0 0.0
    %180 = vmatprep.subr.mxu0 0.0
    %181 = vmatpush2.msra.mxu0 0.0
    %182 = vmatprep.subr.mxu0 0.0
    %183 = vmatpush2.msra.mxu0 0.0
    %184 = vmatprep.subr.mxu0 0.0
    %185 = vmatpush2.msra.mxu0 0.0
    %186 = vmatprep.subr.mxu0 0.0
    %187 = vmatpush2.msra.mxu0 0.0
    %188 = vmatprep.mubr.f32.mxu0 0.0
    %189 = vmatmul.mubr.f32.gmra.mxu0 %v123
    %v190 = vpop.f32.mrf.mxu0
    %v191 = vadd.f32 0.0, %v190
    %v192 = vpop.f32.mrf.mxu0
    %193 = vdwg.mxu0
    %v194 = vmul.f32 %v191, 0.032258064
    %v195 = vrsqrt.pop %v194
    %v196 = vmul.f32 %v194, %v195
    %vm197 = vcmp.eq.f32.partialorder %v194, inf
    %v198 = vsel %vm197, %v194, %v196
    %vm199 = vcmp.eq.f32.partialorder %v194, 0.0
    %v200 = vand.u32 %v194, 2147483648
    %v201 = vsel %vm199, %v200, %v198
    %v202 = vadd.f32 %v201, 1e-08
    %v203 = vrcp.pop %v202
    %s204 = sld [smem:[#allocation2]]
    %v205 = vstv %s204
    %v206 = vmul.f32 %v203, %v205
    %v207 = vmul.f32 %v122, %v206
    %s208 = sld [smem:[#allocation3]]
    %v209 = vstv %s208
    %v210 = vadd.f32 %v207, %v209
    %211 = vst [vmem:[#allocation7] sm:$0xf] %v210
    // Predicated region
    $region22: #{tpu_custom_call.1} parent=1 // pred_check
      _
    $region23: #{tpu_custom_call.1} parent=1 // pred_check_branch
      %213 = sbr.rel (0) target = $region25
    $region24: #{tpu_custom_call.1} parent=1 // pred_region
      %s215 = ssub.s32 64, 64
      %216 = vsyncadd [#allocation6], %s215
      %s218 = sshll.u32 [#allocation7], 4
      %s219 = int_to_ptr.vmem [resolvable:$true] %s218
      %221 = dma.vmem_to_hbm [thread:$0]  %s219, 64, %s4, [#allocation6]
    $region25: #{tpu_custom_call.1} parent=1 // pred_fallthru
      _
    // Predicated region
    $region26: #{tpu_custom_call.1} parent=1 // pred_check
      _
    $region27: #{tpu_custom_call.1} parent=1 // pred_check_branch
      %223 = sbr.rel (0) target = $region29
    $region28: #{tpu_custom_call.1} parent=1 // pred_region
      %224 = dma.done [#allocation6], 64
    $region29: #{tpu_custom_call.1} parent=1 // pred_fallthru
      _
    %225 = vsyncpa [#allocation5], 1
    %226 = vsyncpa [#allocation6], 1

</llo_original>
